<compile_context>
chip_gen: v7x
topology: tpu7x:2x2x1
jax: 0.10.0
libtpu: 0.0.40
codegen_flags: <defaults>
</compile_context>

<pallas_src>
import functools

import jax
import jax.numpy as jnp
from jax.experimental import pallas as pl
from jax.experimental.pallas import tpu as pltpu


# ----------------------------- Pallas kernel ------------------------------ #
def patch_embed_kernel(patches_ref, w_ref, b_ref, o_ref):
    # patches_ref: (TM, K) bf16   w_ref: (K, N) bf16 (VMEM-resident, constant
    # block index)   b_ref: (1, N) f32   o_ref: (TM, N) f32
    acc = jnp.dot(patches_ref[...], w_ref[...],
                  preferred_element_type=jnp.float32)
    o_ref[...] = (acc + b_ref[...]).astype(o_ref.dtype)


# ------------------------------ tile picker -------------------------------- #
def _pick_tm(m, preferred=1024):
    """Big 256-aligned M tiles with cdiv-padded edge blocks; small M uses the
    full extent (full-extent blocks are always layout-legal)."""
    return m if m <= preferred else preferred


# ------------------------------- wrapper ----------------------------------- #
@functools.partial(jax.jit, static_argnames=("patch_size",))
def patch_embed_forward(x, weight, bias, patch_size):
    """x: (B, C, H, W) f32. weight: (E, C, p, p). bias: (E,).
    Returns (tokens (B, gh*gw, E) f32, pos (B, gh*gw, 2) int32)."""
    B, C, H, W = x.shape
    E = weight.shape[0]
    p = patch_size
    assert H % p == 0 and W % p == 0
    gh, gw = H // p, W // p
    num_patches = gh * gw

    # im2col: non-overlapping patches flattened in (c, ph, pw) order to match
    # the OIHW Conv2d weight flattening weight.reshape(E, C*p*p).
    # Cast to bf16 BEFORE the permute so the XLA transpose pass moves 2-byte
    # elements (per perf review).
    xb = x.astype(jnp.bfloat16)
    patches = xb.reshape(B, C, gh, p, gw, p)
    patches = jnp.transpose(patches, (0, 2, 4, 1, 3, 5))
    patches = patches.reshape(B * num_patches, C * p * p)

    wT = weight.reshape(E, C * p * p).T.astype(jnp.bfloat16)  # (K, N)
    b2 = bias.reshape(1, E).astype(jnp.float32)               # (1, N)

    M, K = patches.shape
    N = E

    TM = _pick_tm(M, 1024)          # 1024 is 256-aligned (v6e/v7x) & 128-aligned (v5e)
    grid = (pl.cdiv(M, TM),)        # 1-D grid over M only; N and K untiled

    cost = pl.CostEstimate(
        flops=2 * M * K * N,
        transcendentals=0,
        bytes_accessed=M * K * 2 + K * N * 2 + N * 4 + M * N * 4,
    )

    out = pl.pallas_call(
        patch_embed_kernel,
        out_shape=jax.ShapeDtypeStruct((M, N), jnp.float32),
        grid=grid,
        in_specs=[
            pl.BlockSpec((TM, K), lambda i: (i, 0)),   # patch tiles stream once
            pl.BlockSpec((K, N), lambda i: (0, 0)),    # weight resident (constant index)
            pl.BlockSpec((1, N), lambda i: (0, 0)),    # bias resident
        ],
        out_specs=pl.BlockSpec((TM, N), lambda i: (i, 0)),
        compiler_params=pltpu.CompilerParams(
            dimension_semantics=("parallel",),         # megacore split over M (v7x)
            vmem_limit_bytes=48 * 1024 * 1024,         # headroom under v7x 64 MiB
        ),
        cost_estimate=cost,
    )(patches, wT, b2)

    tokens = out.reshape(B, num_patches, E)  # == conv -> flatten(2) -> transpose(1,2)

    # PositionGetter: cartesian_prod(arange(gh), arange(gw)), expanded over batch.
    ys = jnp.arange(gh, dtype=jnp.int32)
    xs = jnp.arange(gw, dtype=jnp.int32)
    pos = jnp.stack([jnp.repeat(ys, gw), jnp.tile(xs, gh)], axis=-1)
    pos = jnp.broadcast_to(pos.reshape(1, num_patches, 2), (B, num_patches, 2))

    return tokens, pos


# ------------------------------ param init --------------------------------- #
def init_params(key, in_chans, embed_dim, patch_size):
    # Xavier-uniform on weight viewed as (embed_dim, in_chans*p*p) (module._init_weights)
    k_w, k_b = jax.random.split(key)
    fan_in = in_chans * patch_size * patch_size
    fan_out = embed_dim
    bound_w = (6.0 / (fan_in + fan_out)) ** 0.5
    weight = jax.random.uniform(
        k_w, (embed_dim, in_chans, patch_size, patch_size),
        minval=-bound_w, maxval=bound_w, dtype=jnp.float32)
    bound_b = 1.0 / (fan_in ** 0.5)  # Conv2d default bias init
    bias = jax.random.uniform(
        k_b, (embed_dim,), minval=-bound_b, maxval=bound_b, dtype=jnp.float32)
    return weight, bias


# --------------------------------- main ------------------------------------ #
if __name__ == "__main__":
    # Small shapes consistent with the module: img_size=16, patch_size=4,
    # in_chans=4, embed_dim=32, batch=2 -> grid_size=(4,4), num_patches=16.
    B, C, H, W = 2, 4, 16, 16
    P = 4
    E = 32

    key = jax.random.PRNGKey(0)
    k_x, k_p = jax.random.split(key)
    x = jax.random.normal(k_x, (B, C, H, W), dtype=jnp.float32)
    weight, bias = init_params(k_p, C, E, P)

    tokens, pos = patch_embed_forward(x, weight, bias, P)
    tokens = jax.block_until_ready(tokens)
    pos = jax.block_until_ready(pos)

    # Reference: XLA conv with the same bf16 operand cast / f32 accumulation
    # (same semantics as nn.Conv2d stride=kernel).
    ref = jax.lax.conv_general_dilated(
        x.astype(jnp.bfloat16), weight.astype(jnp.bfloat16),
        window_strides=(P, P), padding="VALID",
        dimension_numbers=("NCHW", "OIHW", "NCHW"),
        preferred_element_type=jnp.float32,
    ) + bias.reshape(1, E, 1, 1)
    ref = ref.reshape(B, E, -1).transpose(0, 2, 1)  # flatten(2).transpose(1,2)

    gh, gw = H // P, W // P
    assert tokens.shape == (B, gh * gw, E)
    assert pos.shape == (B, gh * gw, 2)
    assert jnp.allclose(tokens, ref, atol=1e-2, rtol=1e-2)
    # spot-check positions: row-major (y, x) cartesian product
    assert int(pos[0, 0, 0]) == 0 and int(pos[0, 0, 1]) == 0
    assert int(pos[1, gw, 0]) == 1 and int(pos[1, gw, 1]) == 0

    print("KERNEL_OK")
</pallas_src>

<mosaic_0001>
module attributes {stable_mosaic.version = 11 : i64} {
  func.func @patch_embed_kernel(%arg0: i32, %arg1: memref<32x64xbf16, #tpu.memory_space<vmem>>, %arg2: memref<64x32xbf16, #tpu.memory_space<vmem>>, %arg3: memref<1x32xf32, #tpu.memory_space<vmem>>, %arg4: memref<32x32xf32, #tpu.memory_space<vmem>>) attributes {dimension_semantics = [#tpu.dimension_semantics<parallel>], iteration_bounds = array<i64: 1>, scalar_prefetch = 0 : i64, scratch_operands = 0 : i64, tpu.core_type = #tpu.core_type<tc>, window_params = [{transform_indices = @transform_0, window_bounds = array<i64: 32, 64>}, {pipeline_mode = #tpu.pipeline_mode<synchronous>, transform_indices = @transform_1, window_bounds = array<i64: 64, 32>}, {pipeline_mode = #tpu.pipeline_mode<synchronous>, transform_indices = @transform_2, window_bounds = array<i64: 1, 32>}, {transform_indices = @transform_3, window_bounds = array<i64: 32, 32>}]} {
    %c0 = arith.constant 0 : index
    %c0_0 = arith.constant 0 : index
    %0 = vector.load %arg1[%c0, %c0_0] : memref<32x64xbf16, #tpu.memory_space<vmem>>, vector<32x64xbf16>
    %c0_1 = arith.constant 0 : index
    %c0_2 = arith.constant 0 : index
    %1 = vector.load %arg2[%c0_1, %c0_2] : memref<64x32xbf16, #tpu.memory_space<vmem>>, vector<64x32xbf16>
    %cst = arith.constant dense<0.000000e+00> : vector<32x32xf32>
    %2 = tpu.matmul %0, %1, %cst {dimension_numbers = #tpu.dot_dimension_numbers<[1], [0], [0], [1], [0, 0, 1, 1], [], []>} : vector<32x64xbf16>, vector<64x32xbf16>, vector<32x32xf32> -> vector<32x32xf32>
    %c0_3 = arith.constant 0 : index
    %c0_4 = arith.constant 0 : index
    %3 = vector.load %arg3[%c0_3, %c0_4] : memref<1x32xf32, #tpu.memory_space<vmem>>, vector<1x32xf32>
    %4 = vector.broadcast %3 : vector<1x32xf32> to vector<32x32xf32>
    %5 = arith.addf %2, %4 : vector<32x32xf32>
    %c0_5 = arith.constant 0 : index
    %c0_6 = arith.constant 0 : index
    %6 = vector.load %arg4[%c0_5, %c0_6] : memref<32x32xf32, #tpu.memory_space<vmem>>, vector<32x32xf32>
    tpu.vector_store %arg4[%c0_5, %c0_6], %5 {strides = array<i32>} : memref<32x32xf32, #tpu.memory_space<vmem>>, vector<32x32xf32>,
    return
  }
  func.func @transform_0(%arg0: i32) -> (i32, i32) {
    %c0_i32 = arith.constant 0 : i32
    %c0_i32_0 = arith.constant 0 : i32
    return %arg0, %c0_i32 : i32, i32
  }
  func.func @transform_1(%arg0: i32) -> (i32, i32) {
    %c0_i32 = arith.constant 0 : i32
    %c0_i32_0 = arith.constant 0 : i32
    %c0_i32_1 = arith.constant 0 : i32
    return %c0_i32, %c0_i32_0 : i32, i32
  }
  func.func @transform_2(%arg0: i32) -> (i32, i32) {
    %c0_i32 = arith.constant 0 : i32
    %c0_i32_0 = arith.constant 0 : i32
    %c0_i32_1 = arith.constant 0 : i32
    return %c0_i32, %c0_i32_0 : i32, i32
  }
  func.func @transform_3(%arg0: i32) -> (i32, i32) {
    %c0_i32 = arith.constant 0 : i32
    %c0_i32_0 = arith.constant 0 : i32
    return %arg0, %c0_i32 : i32, i32
  }
}

</mosaic_0001>

<llo_original>
// kernel: patch_embed_forward.1
$region0: #{patch_embed_forward.1}
  #allocation0 [shape = 'u32[]', space=smem, size = 0x4, offset = 0x4, fixed_abs, tag = 'smem constant byte address 0x4 - core index']
  #allocation1 [shape = 'u32[144,128]{1,0:T(1,128)}', space=vmem, size = 0x12000, scoped, tag = 'internal scratch']
  %s0 = inlined_call_operand.vmem [shape: bf16[32,64], index: 0, kind: input, shape index: {}]
  %s1 = inlined_call_operand.vmem [shape: bf16[64,32], index: 1, kind: input, shape index: {}]
  %s2 = inlined_call_operand.vmem [shape: f32[1,32], index: 2, kind: input, shape index: {}]
  %s3 = inlined_call_operand.hbm [shape: f32[32,32], index: 3, kind: output, shape index: {}]
  %s4 = sld [smem:[#allocation0]]
  $region22: #{patch_embed_forward.1} parent=0
    _
  %s6 = ssub.s32 1, %s4
  %s7 = scalar_select 0, %s6, %s4
  $region1: #{patch_embed_forward.1} parent=0
    #allocation2 [shape = 'u8[16384]{0}', space=vmem, size = 0x4000, scoped, tag = 'output window, operand 0, single buffered']
    #allocation3 [shape = 's32[1]{0}', space=sflag, size = 0x4, scoped, tag = 'scoped memory for patch_embed_forward.1']
    %8 = vsyncpa [#allocation3], 0
    // Predicated region
    $region2: #{patch_embed_forward.1} parent=1 // pred_check
      _
    $region3: #{patch_embed_forward.1} parent=1 // pred_check_branch
      %10 = sbr.rel (0) target = $region5
    $region4: #{patch_embed_forward.1} parent=1 // pred_region
      _
    $region5: #{patch_embed_forward.1} parent=1 // pred_fallthru
      _
    // Predicated region
    $region6: #{patch_embed_forward.1} parent=1 // pred_check
      _
    $region7: #{patch_embed_forward.1} parent=1 // pred_check_branch
      %12 = sbr.rel (0) target = $region9
    $region8: #{patch_embed_forward.1} parent=1 // pred_region
      _
    $region9: #{patch_embed_forward.1} parent=1 // pred_fallthru
      _
    // Predicated region
    $region10: #{patch_embed_forward.1} parent=1 // pred_check
      _
    $region11: #{patch_embed_forward.1} parent=1 // pred_check_branch
      %14 = sbr.rel (0) target = $region13
    $region12: #{patch_embed_forward.1} parent=1 // pred_region
      _
    $region13: #{patch_embed_forward.1} parent=1 // pred_fallthru
      _
    %v16 = vld [vmem:[%s0] sm:$0xf]
    %v17 = vld [vmem:[%s0 + $0x4] sm:$0xf]
    %v18 = vld [vmem:[%s0 + $0x8] sm:$0xf]
    %v19 = vld [vmem:[%s0 + $0xc] sm:$0xf]
    %v20 = vld [vmem:[%s1] sm:$0xf]
    %v21 = vld [vmem:[%s1 + $0x4] sm:$0xf]
    %v22 = vld [vmem:[%s1 + $0x8] sm:$0xf]
    %v23 = vld [vmem:[%s1 + $0xc] sm:$0xf]
    %v24 = vld [vmem:[%s1 + $0x10] sm:$0xf]
    %v25 = vld [vmem:[%s1 + $0x14] sm:$0xf]
    %v26 = vld [vmem:[%s1 + $0x18] sm:$0xf]
    %v27 = vld [vmem:[%s1 + $0x1c] sm:$0xf]
    %v28 = vld [vmem:[%s2] sm:$0x1]
    %v30 = vlaneseq
    %v31 = vshrl.u32 %v30, 7
    %v32 = vsub.s32 0, %v31
    %v33 = vrot.slane %v28, %v32
    %v39 = vunpack.c.l.b16 %v16
    %v40 = vunpack.c.l.b16 %v17
    %v41 = vunpack.c.l.b16 %v18
    %v42 = vunpack.c.l.b16 %v19
    %v43 = vpack.c.b16 %v40, %v39
    %v44 = vpack.c.b16 %v42, %v41
    %v53 = vunpack.c.l.b16 %v20
    %v54 = vunpack.c.l.b16 %v21
    %v55 = vunpack.c.l.b16 %v22
    %v56 = vunpack.c.l.b16 %v23
    %v57 = vunpack.c.l.b16 %v24
    %v58 = vunpack.c.l.b16 %v25
    %v59 = vunpack.c.l.b16 %v26
    %v60 = vunpack.c.l.b16 %v27
    %v61 = vpack.c.b16 %v54, %v53
    %v62 = vpack.c.b16 %v56, %v55
    %v63 = vpack.c.b16 %v58, %v57
    %v64 = vpack.c.b16 %v60, %v59
    %vm69 = vcmask 523264
    %v71 = vsel %vm69, %v43, 0
    %v74 = vsel %vm69, %v44, 0
    %76 = vmatprep.subr.bf16.mxu0 0
    %77 = vmatpush1.bf16.msra.mxu0 %v61
    %78 = vmatprep.subr.bf16.mxu0 0
    %79 = vmatpush1.bf16.msra.mxu0 %v62
    %80 = vmatprep.subr.bf16.mxu0 0
    %81 = vmatpush1.bf16.msra.mxu0 %v63
    %82 = vmatprep.subr.bf16.mxu0 0
    %83 = vmatpush1.bf16.msra.mxu0 %v64
    %84 = vmatprep.subr.bf16.mxu0 0
    %85 = vmatpush1.bf16.msra.mxu0 0
    %86 = vmatprep.subr.bf16.mxu0 0
    %87 = vmatpush1.bf16.msra.mxu0 0
    %88 = vmatprep.subr.bf16.mxu0 0
    %89 = vmatpush1.bf16.msra.mxu0 0
    %90 = vmatprep.subr.bf16.mxu0 0
    %91 = vmatpush1.bf16.msra.mxu0 0
    %92 = vmatprep.subr.bf16.mxu0 0
    %93 = vmatpush1.bf16.msra.mxu0 0
    %94 = vmatprep.subr.bf16.mxu0 0
    %95 = vmatpush1.bf16.msra.mxu0 0
    %96 = vmatprep.subr.bf16.mxu0 0
    %97 = vmatpush1.bf16.msra.mxu0 0
    %98 = vmatprep.subr.bf16.mxu0 0
    %99 = vmatpush1.bf16.msra.mxu0 0
    %100 = vmatprep.subr.bf16.mxu0 0
    %101 = vmatpush1.bf16.msra.mxu0 0
    %102 = vmatprep.subr.bf16.mxu0 0
    %103 = vmatpush1.bf16.msra.mxu0 0
    %104 = vmatprep.subr.bf16.mxu0 0
    %105 = vmatpush1.bf16.msra.mxu0 0
    %106 = vmatprep.subr.bf16.mxu0 0
    %107 = vmatpush1.bf16.msra.mxu0 0
    %108 = vmatprep.mubr.bf16.mxu0 0
    %109 = vmatmul.mubr.bf16.gmra.mrb[0].mxu0 %v71
    %v110 = vpop.f32.mrb[0].mxu0
    %v111 = vadd.f32 %v33, %v110
    %v112 = vpop.f32.mrb[0].mxu0
    %v113 = vpop.f32.mrb[0].mxu0
    %v114 = vadd.f32 %v33, %v113
    %v115 = vpop.f32.mrb[0].mxu0
    %116 = vmatprep.mubr.bf16.mxu0 0
    %117 = vmatmul.mubr.bf16.gmra.mrb[0].mxu0 %v74
    %v118 = vpop.f32.mrb[0].mxu0
    %v119 = vadd.f32 %v33, %v118
    %v120 = vpop.f32.mrb[0].mxu0
    %v121 = vpop.f32.mrb[0].mxu0
    %v122 = vadd.f32 %v33, %v121
    %v123 = vpop.f32.mrb[0].mxu0
    %124 = vdwg.mxu0
    %vm125 = vcmask 261120
    %126 = vst.msk [vmem:[#allocation2] sm:$0xff] %vm125, %v111
    %127 = vst.msk [vmem:[#allocation2 + $0x8] sm:$0xff] %vm125, %v114
    %128 = vst.msk [vmem:[#allocation2 + $0x10] sm:$0xff] %vm125, %v119
    %129 = vst.msk [vmem:[#allocation2 + $0x18] sm:$0xff] %vm125, %v122
    // Predicated region
    $region14: #{patch_embed_forward.1} parent=1 // pred_check
      _
    $region15: #{patch_embed_forward.1} parent=1 // pred_check_branch
      %131 = sbr.rel (0) target = $region17
    $region16: #{patch_embed_forward.1} parent=1 // pred_region
      %s133 = ssub.s32 512, 512
      %134 = vsyncadd [#allocation3], %s133
      %s135 = sshll.u32 [#allocation2], 4
      %s136 = int_to_ptr.vmem [resolvable:$true] %s135
      %141 = dma.vmem_to_hbm [thread:$0]  %s136, 512, %s3, [#allocation3], 128, 128, 8
    $region17: #{patch_embed_forward.1} parent=1 // pred_fallthru
      _
    // Predicated region
    $region18: #{patch_embed_forward.1} parent=1 // pred_check
      _
    $region19: #{patch_embed_forward.1} parent=1 // pred_check_branch
      %143 = sbr.rel (0) target = $region21
    $region20: #{patch_embed_forward.1} parent=1 // pred_region
      %144 = dma.done [#allocation3], 512
    $region21: #{patch_embed_forward.1} parent=1 // pred_fallthru
      _
    %145 = vsyncpa [#allocation3], 1

</llo_original>
